<compile_context>
chip_gen: v5e
topology: v5e:2x2
jax: 0.10.0
libtpu: 0.0.40
codegen_flags: <defaults>
</compile_context>

<pallas_src>
import functools

import jax
import jax.numpy as jnp
from jax.experimental import pallas as pl
from jax.experimental.pallas import tpu as pltpu


# ~8 MiB tiles: per-grid-step overhead <~5% even at v7x HBM bandwidth, while
# 4x (double-buffered in + out) + slack stays well under every generation's
# physical VMEM with the raised vmem_limit below.
_TARGET_TILE_BYTES = 8 * 1024 * 1024


def _fused_leaky_relu_kernel(x_ref, b_ref, o_ref, *, negative_slope, scale):
    # x_ref / o_ref: (Rb, Lb) VMEM tiles; b_ref: (Rb, 1) per-row bias column.
    v = x_ref[...] + b_ref[...]                          # VPU broadcast-add
    pos = jnp.asarray(scale, v.dtype)                    # scale folded in
    neg = jnp.asarray(scale * negative_slope, v.dtype)
    factor = jnp.where(v >= 0, pos, neg)                 # one select + one mul
    o_ref[...] = (v * factor).astype(o_ref.dtype)


def _largest_divisor_multiple(total, base, cap):
    """Largest divisor of `total` that is a multiple of `base` and <= cap (or None)."""
    best = None
    cap = min(cap, total)
    d = base
    while d <= cap:
        if total % d == 0:
            best = d
        d += base
    return best


def _pick_block(rows, lanes, itemsize, sublane_base):
    # Lane block: multiple of 128 when tiling, or the full dim (always legal).
    if lanes % 128 == 0:
        max_lanes = max(128, _TARGET_TILE_BYTES // (sublane_base * itemsize))
        lb = _largest_divisor_multiple(lanes, 128, max_lanes) or lanes
    else:
        lb = lanes
    # Row block: multiple of the native sublane tile when tiling, or full dim.
    row_budget = max(sublane_base, _TARGET_TILE_BYTES // max(1, lb * itemsize))
    if rows % sublane_base == 0:
        # If the lane axis has only one grid step, keep >= 2 row blocks so the
        # grid can shard across v7x's two TensorCores.
        if lanes // lb <= 1 and rows >= 2 * sublane_base:
            row_budget = min(row_budget, rows // 2)
        rb = _largest_divisor_multiple(rows, sublane_base, row_budget) or rows
    else:
        rb = rows  # full-dim fallback (no padding copy)
    return rb, lb


@functools.partial(jax.jit, static_argnames=("negative_slope", "scale"))
def _fused_leaky_relu_impl(x, bias, negative_slope, scale):
    N, C, H, W = x.shape
    # Note: bias is cast to x.dtype before the add (bf16 inputs add in bf16).
    bias_c = bias.reshape(C).astype(x.dtype)

    itemsize = jnp.dtype(x.dtype).itemsize
    # Native sublane tile: 8 rows for f32, 16 for bf16, 32 for int8/fp8.
    sublane_base = max(8, 32 // itemsize)

    # Pick a lane-dense 2D factorization (contiguous reshapes, free under jit).
    if (H * W) % 128 == 0 or W % 128 != 0:
        R, L = N * C, H * W
        # row r = n*C + c  ->  bias[c]
        bias_rows = jnp.tile(bias_c, N).reshape(R, 1)
    else:
        # H*W not lane-aligned but W is: flatten rows as (N*C*H, W).
        R, L = N * C * H, W
        # row r = (n*C + c)*H + h  ->  bias[c]
        bias_rows = jnp.tile(jnp.repeat(bias_c, H), N).reshape(R, 1)
    x2 = x.reshape(R, L)

    rb, lb = _pick_block(R, L, itemsize, sublane_base)
    grid = (R // rb, L // lb)

    tile_bytes = rb * lb * itemsize
    # in + out double-buffered, bias buffers, plus slack; clamp to a range that
    # is safe on v5e/v6e (128 MiB physical) and v7x (64 MiB physical).
    need = 4 * tile_bytes + 4 * rb * itemsize + (2 << 20)
    vmem_limit = int(min(max(need, 32 << 20), 48 << 20))

    kernel = functools.partial(
        _fused_leaky_relu_kernel, negative_slope=negative_slope, scale=scale
    )

    out2 = pl.pallas_call(
        kernel,
        out_shape=jax.ShapeDtypeStruct((R, L), x.dtype),
        grid=grid,
        in_specs=[
            pl.BlockSpec((rb, lb), lambda i, j: (i, j)),
            pl.BlockSpec((rb, 1), lambda i, j: (i, 0)),
        ],
        out_specs=pl.BlockSpec((rb, lb), lambda i, j: (i, j)),
        compiler_params=pltpu.CompilerParams(
            dimension_semantics=("parallel", "parallel"),
            vmem_limit_bytes=vmem_limit,
        ),
        cost_estimate=pl.CostEstimate(
            flops=3 * R * L,
            transcendentals=0,
            bytes_accessed=2 * R * L * itemsize + R * itemsize,
        ),
    )(x2, bias_rows)

    return out2.reshape(N, C, H, W)


def fused_leaky_relu(x, bias, negative_slope=0.2, scale=2 ** 0.5):
    """x: (N, C, H, W); bias: anything reshapeable to (C,) (e.g. (1, C, 1, 1))."""
    N, C, H, W = x.shape
    if bias.size != C:
        raise ValueError(f"bias has {bias.size} elements, expected {C}")
    return _fused_leaky_relu_impl(x, bias, float(negative_slope), float(scale))


class FusedLeakyReLU:
    """JAX mirror of the PyTorch module; bias initialized to zeros like nn.Parameter(torch.zeros(...))."""

    def __init__(self, channel, negative_slope=0.2, scale=2 ** 0.5):
        self.bias = jnp.zeros((1, channel, 1, 1), dtype=jnp.float32)
        self.negative_slope = negative_slope
        self.scale = scale

    def __call__(self, x):
        return fused_leaky_relu(x, self.bias, self.negative_slope, self.scale)


if __name__ == "__main__":
    key = jax.random.PRNGKey(0)
    N, C, H, W = 2, 4, 16, 16
    x = jax.random.normal(key, (N, C, H, W), dtype=jnp.float32)

    mod = FusedLeakyReLU(channel=C)
    # deterministic nonzero bias to exercise the per-channel broadcast path
    mod.bias = jax.random.normal(jax.random.PRNGKey(1), (1, C, 1, 1), dtype=jnp.float32)

    out = mod(x)
    jax.block_until_ready(out)

    # reference check in plain JAX
    v = x + mod.bias
    ref = jnp.where(v >= 0, v, v * 0.2) * (2 ** 0.5)
    assert out.shape == (N, C, H, W)
    assert jnp.allclose(out, ref, atol=1e-6, rtol=1e-6)

    print("KERNEL_OK")
</pallas_src>

<mosaic_0001>
module attributes {stable_mosaic.version = 11 : i64} {
  func.func @_fused_leaky_relu_kernel(%arg0: i32, %arg1: i32, %arg2: memref<8x256xf32, #tpu.memory_space<vmem>>, %arg3: memref<8x1xf32, #tpu.memory_space<vmem>>, %arg4: memref<8x256xf32, #tpu.memory_space<vmem>>) attributes {dimension_semantics = [#tpu.dimension_semantics<parallel>, #tpu.dimension_semantics<parallel>], iteration_bounds = array<i64: 1, 1>, scalar_prefetch = 0 : i64, scratch_operands = 0 : i64, tpu.core_type = #tpu.core_type<tc>, window_params = [{transform_indices = @transform_0, window_bounds = array<i64: 8, 256>}, {transform_indices = @transform_1, window_bounds = array<i64: 8, 1>}, {transform_indices = @transform_2, window_bounds = array<i64: 8, 256>}]} {
    %c0 = arith.constant 0 : index
    %c0_0 = arith.constant 0 : index
    %0 = vector.load %arg2[%c0, %c0_0] : memref<8x256xf32, #tpu.memory_space<vmem>>, vector<8x256xf32>
    %c0_1 = arith.constant 0 : index
    %c0_2 = arith.constant 0 : index
    %1 = vector.load %arg3[%c0_1, %c0_2] : memref<8x1xf32, #tpu.memory_space<vmem>>, vector<8x1xf32>
    %2 = vector.broadcast %1 : vector<8x1xf32> to vector<8x256xf32>
    %3 = arith.addf %0, %2 : vector<8x256xf32>
    %cst = arith.constant 0.000000e+00 : f32
    %4 = vector.broadcast %cst : f32 to vector<8x256xf32>
    %5 = arith.cmpf oge, %3, %4 : vector<8x256xf32>
    %cst_3 = arith.constant 1.41421354 : f32
    %cst_4 = arith.constant 0.282842726 : f32
    %6 = vector.broadcast %cst_3 : f32 to vector<8x256xf32>
    %7 = vector.broadcast %cst_4 : f32 to vector<8x256xf32>
    %8 = arith.select %5, %6, %7 : vector<8x256xi1>, vector<8x256xf32>
    %9 = arith.mulf %3, %8 : vector<8x256xf32>
    %c0_5 = arith.constant 0 : index
    %c0_6 = arith.constant 0 : index
    %10 = vector.load %arg4[%c0_5, %c0_6] : memref<8x256xf32, #tpu.memory_space<vmem>>, vector<8x256xf32>
    tpu.vector_store %arg4[%c0_5, %c0_6], %9 {strides = array<i32>} : memref<8x256xf32, #tpu.memory_space<vmem>>, vector<8x256xf32>,
    return
  }
  func.func @transform_0(%arg0: i32, %arg1: i32) -> (i32, i32) {
    %c0_i32 = arith.constant 0 : i32
    return %arg0, %arg1 : i32, i32
  }
  func.func @transform_1(%arg0: i32, %arg1: i32) -> (i32, i32) {
    %c0_i32 = arith.constant 0 : i32
    %c0_i32_0 = arith.constant 0 : i32
    return %arg0, %c0_i32 : i32, i32
  }
  func.func @transform_2(%arg0: i32, %arg1: i32) -> (i32, i32) {
    %c0_i32 = arith.constant 0 : i32
    return %arg0, %arg1 : i32, i32
  }
}

</mosaic_0001>

<llo_original>
// kernel: tile.0
$region0: #{tile.0}
  %s0 = inlined_call_operand.vmem [shape: f32[2,4], index: 0, kind: input, shape index: {}]
  %s1 = inlined_call_operand.vmem [shape: f32[8,1], index: 1, kind: output, shape index: {}]
  $region1: #{tile.0} parent=0
    #allocation0 [shape = 'u8[4096]{0}', space=vmem, size = 0x1000, scoped, tag = 'scoped mem for input reshape']
    %s3 = ssub.s32 4, 1
    %v4 = vld [vmem:[%s0] sm:%s3]
    %5 = vst [vmem:[#allocation0] sm:%s3] %v4
    %v6 = vld [vmem:[#allocation0] sm:$0x3]
    %vm7 = vcmask 7168
    %8 = vst.msk [vmem:[%s1] ss:$4 sm:$0x3] %vm7, %v6
    %v9 = vld [vmem:[#allocation0] sm:$0x3]
    %10 = vrot.lane.b32.xlu0 %v9, 127
    %v11 = vpop.permute.xlu0 %10
    %vm12 = vcmask 7168
    %s13 = scalar_lea.vmem %s1, 1
    %14 = vst.msk [vmem:[%s13] ss:$4 sm:$0x3] %vm12, %v11
    %v15 = vld [vmem:[#allocation0] sm:$0x3]
    %16 = vrot.lane.b32.xlu0 %v15, 126
    %v17 = vpop.permute.xlu0 %16
    %vm18 = vcmask 7168
    %s19 = scalar_lea.vmem %s1, 2
    %20 = vst.msk [vmem:[%s19] ss:$4 sm:$0x3] %vm18, %v17
    %v21 = vld [vmem:[#allocation0] sm:$0x3]
    %22 = vrot.lane.b32.xlu0 %v21, 125
    %v23 = vpop.permute.xlu0 %22
    %vm24 = vcmask 7168
    %s25 = scalar_lea.vmem %s1, 3
    %26 = vst.msk [vmem:[%s25] ss:$4 sm:$0x3] %vm24, %v23

// kernel: tile.6
$region0: #{tile.6}
  #allocation0 [shape = 's32[1]{0}', space=sflag, size = 0x4, scoped, tag = 'scoped memory for tile.6']
  %s0 = inlined_call_operand.vmem [shape: f32[4], index: 0, kind: input, shape index: {}]
  %s1 = inlined_call_operand.vmem [shape: f32[2,4], index: 1, kind: output, shape index: {}]
  // Predicated region
  $region2: #{tile.6} parent=0 // pred_check
    _
  $region3: #{tile.6} parent=0 // pred_check_branch
    %3 = sbr.rel (0) target = $region5
  $region4: #{tile.6} parent=0 // pred_region
    _
  $region5: #{tile.6} parent=0 // pred_fallthru
    _
  %v4 = vld [vmem:[%s0] ss:$0 sm:$0xff]
  %5 = vst [vmem:[%s1] sm:$0x3] %v4

// kernel: _fused_leaky_relu_impl.1
$region0: #{_fused_leaky_relu_impl.1}
  #allocation0 [shape = 'u32[]', space=smem, size = 0x4, offset = 0x4, fixed_abs, tag = 'smem constant byte address 0x4 - core index']
  #allocation1 [shape = 'u32[72,128]{1,0:T(1,128)}', space=vmem, size = 0x9000, scoped, tag = 'internal scratch']
  %s0 = inlined_call_operand.vmem [shape: f32[8,256], index: 0, kind: input, shape index: {}]
  %s1 = inlined_call_operand.vmem [shape: f32[8,1], index: 1, kind: input, shape index: {}]
  %s2 = inlined_call_operand.vmem [shape: f32[8,256], index: 2, kind: output, shape index: {}]
  %s3 = sld [smem:[#allocation0]]
  $region18: #{_fused_leaky_relu_impl.1} parent=0
    _
  %s5 = ssub.s32 1, %s3
  %s6 = scalar_select 0, %s5, %s3
  // Predicated region
  $region2: #{_fused_leaky_relu_impl.1} parent=0 // pred_check
    _
  $region3: #{_fused_leaky_relu_impl.1} parent=0 // pred_check_branch
    %8 = sbr.rel (0) target = $region5
  $region4: #{_fused_leaky_relu_impl.1} parent=0 // pred_region
    _
  $region5: #{_fused_leaky_relu_impl.1} parent=0 // pred_fallthru
    _
  // Predicated region
  $region6: #{_fused_leaky_relu_impl.1} parent=0 // pred_check
    _
  $region7: #{_fused_leaky_relu_impl.1} parent=0 // pred_check_branch
    %10 = sbr.rel (0) target = $region9
  $region8: #{_fused_leaky_relu_impl.1} parent=0 // pred_region
    _
  $region9: #{_fused_leaky_relu_impl.1} parent=0 // pred_fallthru
    _
  %v11 = vld [vmem:[%s0] sm:$0xff]
  %v12 = vld [vmem:[%s0 + $0x8] sm:$0xff]
  %v13 = vld [vmem:[%s1] sm:$0xff]
  %15 = vset.pattern.permute.xlu0 0
  %16 = vperm.xlu0 %15, %v13
  %v17 = vpop.permute.xlu0 %16
  %v19 = vadd.f32 %v11, %v17
  %v20 = vadd.f32 %v12, %v17
  %vm21 = vcmp.ge.f32.partialorder %v19, 0.0
  %vm22 = vcmp.ge.f32.partialorder %v20, 0.0
  %v23 = vsel %vm21, 1.4142135, 0.28284273
  %v24 = vsel %vm22, 1.4142135, 0.28284273
  %v25 = vmul.f32 %v19, %v23
  %v26 = vmul.f32 %v20, %v24
  %27 = vst [vmem:[%s2] sm:$0xff] %v25
  %28 = vst [vmem:[%s2 + $0x8] sm:$0xff] %v26
  // Predicated region
  $region10: #{_fused_leaky_relu_impl.1} parent=0 // pred_check
    _
  $region11: #{_fused_leaky_relu_impl.1} parent=0 // pred_check_branch
    %30 = sbr.rel (0) target = $region13
  $region12: #{_fused_leaky_relu_impl.1} parent=0 // pred_region
    _
  $region13: #{_fused_leaky_relu_impl.1} parent=0 // pred_fallthru
    _
  // Predicated region
  $region14: #{_fused_leaky_relu_impl.1} parent=0 // pred_check
    _
  $region15: #{_fused_leaky_relu_impl.1} parent=0 // pred_check_branch
    %32 = sbr.rel (0) target = $region17
  $region16: #{_fused_leaky_relu_impl.1} parent=0 // pred_region
    _
  $region17: #{_fused_leaky_relu_impl.1} parent=0 // pred_fallthru
    _

</llo_original>
